<compile_context>
chip_gen: v7x
topology: tpu7x:2x2x1
jax: 0.10.0
libtpu: 0.0.40
codegen_flags: <defaults>
</compile_context>

<pallas_src>
import jax
import jax.numpy as jnp
from jax.experimental import pallas as pl
from jax.experimental.pallas import tpu as pltpu


_FAST_PATH_BYTES = 512 * 1024   # whole-problem-in-one-VMEM-block threshold
_CONTRACT_LAST = (((1,), (1,)), ((), ()))   # contract x's last dim with w's last dim


def _round_up(x, m):
    return (x + m - 1) // m * m


def _vmem_capacity_bytes():
    try:
        info = pltpu.get_tpu_info()
        cap = getattr(info, "vmem_capacity_bytes", None)
        if cap:
            return int(cap)
    except Exception:
        pass
    return 64 << 20   # conservative default (v7x per-TC VMEM)


# ---------------------------------------------------------------------------
# Kernels
# ---------------------------------------------------------------------------

def _linear_single_kernel(x_ref, w_ref, b_ref, o_ref):
    """Single K step (also the whole-problem fast path): y = x @ w.T + b."""
    acc = jax.lax.dot_general(x_ref[...], w_ref[...],
                              dimension_numbers=_CONTRACT_LAST,
                              preferred_element_type=jnp.float32)
    o_ref[...] = (acc + b_ref[...].astype(jnp.float32)).astype(o_ref.dtype)


def _linear_acc_out_kernel(x_ref, w_ref, b_ref, o_ref):
    """Multi-step K, f32 output: accumulate directly into the VMEM-resident
    output block. Bias broadcast is the k==0 init, so no epilogue and no
    scratch accumulator are needed."""
    @pl.when(pl.program_id(2) == 0)
    def _init():
        o_ref[...] = jnp.broadcast_to(b_ref[...].astype(jnp.float32), o_ref.shape)

    o_ref[...] += jax.lax.dot_general(x_ref[...], w_ref[...],
                                      dimension_numbers=_CONTRACT_LAST,
                                      preferred_element_type=jnp.float32)


def _linear_scratch_kernel(x_ref, w_ref, b_ref, o_ref, acc_ref):
    """Multi-step K, narrow output dtype: f32 VMEM scratch accumulator,
    bias-add + cast only in the final k step."""
    k = pl.program_id(2)

    @pl.when(k == 0)
    def _init():
        acc_ref[...] = jnp.zeros_like(acc_ref)

    acc_ref[...] += jax.lax.dot_general(x_ref[...], w_ref[...],
                                        dimension_numbers=_CONTRACT_LAST,
                                        preferred_element_type=jnp.float32)

    @pl.when(k == pl.num_programs(2) - 1)
    def _fin():
        o_ref[...] = (acc_ref[...] + b_ref[...].astype(jnp.float32)).astype(o_ref.dtype)


# ---------------------------------------------------------------------------
# Wrapper
# ---------------------------------------------------------------------------

def dummy_model_forward(x, weight, bias, *, compute_dtype=None,
                        tm_max=None, tn_max=None, tk_max=None):
    """y = x @ weight.T + bias  (exact nn.Linear forward semantics).

    x:      [batch, in_features]
    weight: [out_features, in_features]   (PyTorch layout, never transposed)
    bias:   [out_features]
    compute_dtype: optionally cast MXU operands (e.g. jnp.bfloat16) while
                   keeping f32 accumulation (changes numerics, opt-in).
    tm_max/tn_max/tk_max: optional tile-cap overrides (testing / tuning).
    """
    out_dtype = x.dtype
    M, K = x.shape
    N, K_w = weight.shape
    assert K == K_w and bias.shape == (N,)

    # Cast BEFORE padding so the convert fuses with the pad into one HBM pass.
    if compute_dtype is not None and x.dtype != jnp.dtype(compute_dtype):
        x = x.astype(compute_dtype)
    if compute_dtype is not None and weight.dtype != jnp.dtype(compute_dtype):
        weight = weight.astype(compute_dtype)

    in_isz = jnp.dtype(x.dtype).itemsize
    out_isz = jnp.dtype(out_dtype).itemsize
    b2d = bias.reshape(1, N)

    # ---- small-shape fast path: one unpadded VMEM block, no grid, no pad ----
    small_bytes = (x.size + weight.size + b2d.size) * in_isz + M * N * (out_isz + 4)
    if small_bytes <= _FAST_PATH_BYTES:
        return pl.pallas_call(
            _linear_single_kernel,
            out_shape=jax.ShapeDtypeStruct((M, N), out_dtype),
            in_specs=[pl.BlockSpec(memory_space=pltpu.MemorySpace.VMEM)] * 3,
            out_specs=pl.BlockSpec(memory_space=pltpu.MemorySpace.VMEM),
        )(x, weight, b2d)

    # ---- tile selection (generation-aware) ----
    vmem_cap = _vmem_capacity_bytes()
    budget = int(vmem_cap * 0.40)            # double-buffered footprint budget

    sub = max(8, 8 * (4 // in_isz))          # packed sublane multiple for tm
    lane_n = 256 if N > 128 else 128         # full-width MXU panels on v6e/v7x
    lane_k = 256 if K > 128 else 128

    tm_cap = tm_max if tm_max is not None else 512
    tn_cap = tn_max if tn_max is not None else 512
    tk_cap = tk_max if tk_max is not None else (2048 if in_isz < 4 else 1024)
    tm_cap = max(sub, (tm_cap // sub) * sub)
    tn_cap = max(lane_n, (tn_cap // lane_n) * lane_n)
    tk_cap = max(lane_k, (tk_cap // lane_k) * lane_k)

    tm = min(tm_cap, _round_up(M, sub))
    tn = min(tn_cap, _round_up(N, lane_n))
    tk = min(tk_cap, _round_up(K, lane_k))

    def footprint(tm_, tn_, tk_):
        # 2x input buffers + 2x output buffers + f32 accumulator (upper bound).
        return (2 * (tm_ * tk_ + tn_ * tk_ + tn_) * in_isz
                + 2 * tm_ * tn_ * out_isz
                + tm_ * tn_ * 4)

    while footprint(tm, tn, tk) > budget:
        if tk // 2 >= lane_k:
            tk = _round_up(tk // 2, lane_k)
        elif tn // 2 >= lane_n:
            tn = _round_up(tn // 2, lane_n)
        elif tm // 2 >= sub:
            tm = _round_up(tm // 2, sub)
        else:
            break

    # ---- pad to tile multiples (padded K contributes 0 to the reduction) ----
    M_p, N_p, K_p = _round_up(M, tm), _round_up(N, tn), _round_up(K, tk)
    if (M_p, K_p) != (M, K):
        x = jnp.pad(x, ((0, M_p - M), (0, K_p - K)))
    if (N_p, K_p) != (N, K):
        weight = jnp.pad(weight, ((0, N_p - N), (0, K_p - K)))
    if N_p != N:
        b2d = jnp.pad(b2d, ((0, 0), (0, N_p - N)))

    gm, gn, gk = M_p // tm, N_p // tn, K_p // tk

    # Skinny-M: lead with the N axis so both v7x TensorCores get blocks.
    if gm == 1 and gn > 1:
        grid = (gn, gm, gk)
        x_map = lambda j, i, k: (i, k)
        w_map = lambda j, i, k: (j, k)
        b_map = lambda j, i, k: (0, j)
        o_map = lambda j, i, k: (i, j)
    else:
        grid = (gm, gn, gk)
        x_map = lambda i, j, k: (i, k)
        w_map = lambda i, j, k: (j, k)
        b_map = lambda i, j, k: (0, j)
        o_map = lambda i, j, k: (i, j)

    # ---- kernel specialization ----
    if gk == 1:
        kernel = _linear_single_kernel
        scratch = ()
    elif jnp.dtype(out_dtype) == jnp.dtype(jnp.float32):
        kernel = _linear_acc_out_kernel
        scratch = ()
    else:
        kernel = _linear_scratch_kernel
        scratch = (pltpu.VMEM((tm, tn), jnp.float32),)

    # Honest HBM traffic (panel re-reads) for XLA's scheduler.
    bytes_accessed = (M_p * K_p * in_isz * gn
                      + N_p * K_p * in_isz * gm
                      + N_p * jnp.dtype(bias.dtype).itemsize * gm
                      + M_p * N_p * out_isz)
    cost = pl.CostEstimate(flops=2 * M_p * N_p * K_p, transcendentals=0,
                           bytes_accessed=int(bytes_accessed))

    fp = footprint(tm, tn, tk)
    vmem_limit = int(min(min(vmem_cap, 128 << 20), max(fp + fp // 2, 32 << 20)))

    out_p = pl.pallas_call(
        kernel,
        out_shape=jax.ShapeDtypeStruct((M_p, N_p), out_dtype),
        grid_spec=pltpu.PrefetchScalarGridSpec(
            num_scalar_prefetch=0,
            grid=grid,
            in_specs=[
                pl.BlockSpec((tm, tk), x_map),   # x       [M_p, K_p]
                pl.BlockSpec((tn, tk), w_map),   # weight  [N_p, K_p] (PyTorch layout)
                pl.BlockSpec((1, tn), b_map),    # bias    [1,   N_p]
            ],
            out_specs=pl.BlockSpec((tm, tn), o_map),
            scratch_shapes=scratch,
        ),
        compiler_params=pltpu.CompilerParams(
            dimension_semantics=("parallel", "parallel", "arbitrary"),
            vmem_limit_bytes=vmem_limit),
        cost_estimate=cost,
    )(x, weight, b2d)

    return out_p[:M, :N] if (M_p, N_p) != (M, N) else out_p


def init_linear_params(key, in_features, out_features, dtype=jnp.float32):
    # Deterministic init mimicking nn.Linear: U(-1/sqrt(in), 1/sqrt(in)).
    kw, kb = jax.random.split(key)
    bound = 1.0 / (in_features ** 0.5)
    weight = jax.random.uniform(kw, (out_features, in_features), dtype,
                                minval=-bound, maxval=bound)
    bias = jax.random.uniform(kb, (out_features,), dtype,
                              minval=-bound, maxval=bound)
    return weight, bias


if __name__ == "__main__":
    key = jax.random.PRNGKey(0)
    k_x, k_p, k_x2, k_p2 = jax.random.split(key, 4)

    # --- DummyModel demo: nn.Linear(32, 16), batch=8 (small-shape fast path) ---
    batch, in_features, out_features = 8, 32, 16
    x = jax.random.normal(k_x, (batch, in_features), jnp.float32)
    weight, bias = init_linear_params(k_p, in_features, out_features)

    y = dummy_model_forward(x, weight, bias)
    jax.block_until_ready(y)
    y_ref = x @ weight.T + bias
    assert y.shape == (batch, out_features)
    assert jnp.allclose(y, y_ref, atol=1e-5, rtol=1e-5)

    # --- tiled path, multi-K, f32 output (accumulate-into-output kernel) ---
    M2, K2, N2 = 128, 640, 384
    x2 = jax.random.normal(k_x2, (M2, K2), jnp.float32)
    w2, b2 = init_linear_params(k_p2, K2, N2)
    y2 = dummy_model_forward(x2, w2, b2, tm_max=128, tn_max=256, tk_max=256)
    jax.block_until_ready(y2)
    y2_ref = jnp.dot(x2, w2.T, precision=jax.lax.Precision.HIGHEST) + b2
    assert jnp.allclose(y2, y2_ref, atol=1e-4, rtol=1e-4)

    # --- tiled path, multi-K, bf16 output (scratch-accumulator kernel) ---
    x3 = x2.astype(jnp.bfloat16)
    w3 = w2.astype(jnp.bfloat16)
    b3 = b2.astype(jnp.bfloat16)
    y3 = dummy_model_forward(x3, w3, b3, tm_max=128, tn_max=256, tk_max=256)
    jax.block_until_ready(y3)
    y3_ref = (jnp.dot(x3.astype(jnp.float32), w3.astype(jnp.float32).T,
                      precision=jax.lax.Precision.HIGHEST)
              + b3.astype(jnp.float32))
    assert jnp.allclose(y3.astype(jnp.float32), y3_ref, atol=5e-2, rtol=5e-2)

    print("KERNEL_OK")
</pallas_src>

<mosaic_0001>
module attributes {stable_mosaic.version = 11 : i64} {
  func.func @_linear_single_kernel(%arg0: memref<8x32xf32, #tpu.memory_space<vmem>>, %arg1: memref<16x32xf32, #tpu.memory_space<vmem>>, %arg2: memref<1x16xf32, #tpu.memory_space<vmem>>, %arg3: memref<8x16xf32, #tpu.memory_space<vmem>>) attributes {dimension_semantics = [], scalar_prefetch = 0 : i64, scratch_operands = 0 : i64, tpu.core_type = #tpu.core_type<tc>} {
    %c0 = arith.constant 0 : index
    %c0_0 = arith.constant 0 : index
    %0 = vector.load %arg0[%c0, %c0_0] : memref<8x32xf32, #tpu.memory_space<vmem>>, vector<8x32xf32>
    %c0_1 = arith.constant 0 : index
    %c0_2 = arith.constant 0 : index
    %1 = vector.load %arg1[%c0_1, %c0_2] : memref<16x32xf32, #tpu.memory_space<vmem>>, vector<16x32xf32>
    %cst = arith.constant dense<0.000000e+00> : vector<8x16xf32>
    %2 = tpu.matmul %0, %1, %cst {dimension_numbers = #tpu.dot_dimension_numbers<[1], [1], [0], [0], [0, 0, 1, 0], [], []>} : vector<8x32xf32>, vector<16x32xf32>, vector<8x16xf32> -> vector<8x16xf32>
    %c0_3 = arith.constant 0 : index
    %c0_4 = arith.constant 0 : index
    %3 = vector.load %arg2[%c0_3, %c0_4] : memref<1x16xf32, #tpu.memory_space<vmem>>, vector<1x16xf32>
    %4 = vector.broadcast %3 : vector<1x16xf32> to vector<8x16xf32>
    %5 = arith.addf %2, %4 : vector<8x16xf32>
    %c0_5 = arith.constant 0 : index
    %c0_6 = arith.constant 0 : index
    %6 = vector.load %arg3[%c0_5, %c0_6] : memref<8x16xf32, #tpu.memory_space<vmem>>, vector<8x16xf32>
    tpu.vector_store %arg3[%c0_5, %c0_6], %5 {strides = array<i32>} : memref<8x16xf32, #tpu.memory_space<vmem>>, vector<8x16xf32>,
    return
  }
}

</mosaic_0001>

<llo_original>
// kernel: tpu_custom_call.1
$region0: #{tpu_custom_call.1}
  #allocation0 [shape = 'u32[]', space=smem, size = 0x4, offset = 0x4, fixed_abs, tag = 'smem constant byte address 0x4 - core index']
  #allocation1 [shape = 'u32[144,128]{1,0:T(1,128)}', space=vmem, size = 0x12000, scoped, tag = 'internal scratch']
  %s0 = inlined_call_operand.hbm [shape: f32[8,32], index: 0, kind: input, shape index: {}]
  %s1 = inlined_call_operand.hbm [shape: f32[16,32], index: 1, kind: input, shape index: {}]
  %s2 = inlined_call_operand.vmem [shape: f32[1,16], index: 2, kind: input, shape index: {}]
  %s3 = inlined_call_operand.hbm [shape: f32[8,16], index: 3, kind: output, shape index: {}]
  %s4 = sld [smem:[#allocation0]]
  $region30: #{tpu_custom_call.1} parent=0
    _
  %s6 = ssub.s32 1, %s4
  %s7 = scalar_select 0, %s6, %s4
  $region1: #{tpu_custom_call.1} parent=0
    #allocation2 [shape = 'u8[4096]{0}', space=vmem, size = 0x1000, scoped, tag = 'input window, operand 0, single buffered']
    #allocation3 [shape = 's32[1]{0}', space=sflag, size = 0x4, scoped, tag = 'scoped memory for tpu_custom_call.1']
    #allocation4 [shape = 's32[1]{0}', space=sflag, size = 0x4, scoped, tag = 'scoped memory for tpu_custom_call.1']
    #allocation5 [shape = 'u8[8192]{0}', space=vmem, size = 0x2000, scoped, tag = 'input window, operand 1, single buffered']
    #allocation6 [shape = 's32[1]{0}', space=sflag, size = 0x4, scoped, tag = 'scoped memory for tpu_custom_call.1']
    #allocation7 [shape = 'u8[4096]{0}', space=vmem, size = 0x1000, scoped, tag = 'output window, operand 0, single buffered']
    %8 = vsyncpa [#allocation3], 0
    %9 = vsyncpa [#allocation6], 0
    %10 = vsyncpa [#allocation4], 0
    // Predicated region
    $region2: #{tpu_custom_call.1} parent=1 // pred_check
      _
    $region3: #{tpu_custom_call.1} parent=1 // pred_check_branch
      %12 = sbr.rel (0) target = $region5
    $region4: #{tpu_custom_call.1} parent=1 // pred_region
      %s14 = ssub.s32 128, 128
      %15 = vsyncadd [#allocation3], %s14
      %s17 = sshll.u32 [#allocation2], 4
      %s18 = int_to_ptr.vmem [resolvable:$true] %s17
      %20 = dma.hbm_to_vmem [thread:$0]  %s0, 128, %s18, [#allocation3]
    $region5: #{tpu_custom_call.1} parent=1 // pred_fallthru
      _
    // Predicated region
    $region6: #{tpu_custom_call.1} parent=1 // pred_check
      _
    $region7: #{tpu_custom_call.1} parent=1 // pred_check_branch
      %22 = sbr.rel (0) target = $region9
    $region8: #{tpu_custom_call.1} parent=1 // pred_region
      %s24 = ssub.s32 256, 256
      %25 = vsyncadd [#allocation6], %s24
      %s26 = sshll.u32 [#allocation5], 4
      %s27 = int_to_ptr.vmem [resolvable:$true] %s26
      %32 = dma.hbm_to_vmem [thread:$0]  %s1, 256, %s27, [#allocation6], 128, 128, 8
    $region9: #{tpu_custom_call.1} parent=1 // pred_fallthru
      _
    // Predicated region
    $region10: #{tpu_custom_call.1} parent=1 // pred_check
      _
    $region11: #{tpu_custom_call.1} parent=1 // pred_check_branch
      %34 = sbr.rel (0) target = $region13
    $region12: #{tpu_custom_call.1} parent=1 // pred_region
      _
    $region13: #{tpu_custom_call.1} parent=1 // pred_fallthru
      _
    // Predicated region
    $region14: #{tpu_custom_call.1} parent=1 // pred_check
      _
    $region15: #{tpu_custom_call.1} parent=1 // pred_check_branch
      %36 = sbr.rel (0) target = $region17
    $region16: #{tpu_custom_call.1} parent=1 // pred_region
      %37 = dma.done [#allocation3], 128
    $region17: #{tpu_custom_call.1} parent=1 // pred_fallthru
      _
    // Predicated region
    $region18: #{tpu_custom_call.1} parent=1 // pred_check
      _
    $region19: #{tpu_custom_call.1} parent=1 // pred_check_branch
      %39 = sbr.rel (0) target = $region21
    $region20: #{tpu_custom_call.1} parent=1 // pred_region
      %40 = dma.done [#allocation6], 256
    $region21: #{tpu_custom_call.1} parent=1 // pred_fallthru
      _
    %v41 = vld [vmem:[#allocation2] sm:$0xff]
    %v42 = vld [vmem:[#allocation5] sm:$0xff]
    %v43 = vld [vmem:[#allocation5 + $0x8] sm:$0xff]
    %v44 = vld [vmem:[%s2] sm:$0x1]
    %v46 = vlaneseq
    %v47 = vshrl.u32 %v46, 7
    %v48 = vsub.s32 0, %v47
    %v49 = vrot.slane %v44, %v48
    %vm51 = vcmask 261120
    %v53 = vsel %vm51, %v41, 0
    %v56 = vsel %vm51, %v42, 0
    %v59 = vsel %vm51, %v43, 0
    %61 = vmatprep.subr.mxu0 0.0
    %62 = vmatpush1.xpose.msra.mxu0 %v56
    %63 = vmatprep.subr.mxu0 0.0
    %64 = vmatpush1.xpose.msra.mxu0 %v59
    %65 = vmatprep.subr.mxu0 0.0
    %66 = vmatpush1.xpose.msra.mxu0 0.0
    %67 = vmatprep.subr.mxu0 0.0
    %68 = vmatpush1.xpose.msra.mxu0 0.0
    %69 = vmatprep.subr.mxu0 0.0
    %70 = vmatpush1.xpose.msra.mxu0 0.0
    %71 = vmatprep.subr.mxu0 0.0
    %72 = vmatpush1.xpose.msra.mxu0 0.0
    %73 = vmatprep.subr.mxu0 0.0
    %74 = vmatpush1.xpose.msra.mxu0 0.0
    %75 = vmatprep.subr.mxu0 0.0
    %76 = vmatpush1.xpose.msra.mxu0 0.0
    %77 = vmatprep.subr.mxu0 0.0
    %78 = vmatpush1.xpose.msra.mxu0 0.0
    %79 = vmatprep.subr.mxu0 0.0
    %80 = vmatpush1.xpose.msra.mxu0 0.0
    %81 = vmatprep.subr.mxu0 0.0
    %82 = vmatpush1.xpose.msra.mxu0 0.0
    %83 = vmatprep.subr.mxu0 0.0
    %84 = vmatpush1.xpose.msra.mxu0 0.0
    %85 = vmatprep.subr.mxu0 0.0
    %86 = vmatpush1.xpose.msra.mxu0 0.0
    %87 = vmatprep.subr.mxu0 0.0
    %88 = vmatpush1.xpose.msra.mxu0 0.0
    %89 = vmatprep.subr.mxu0 0.0
    %90 = vmatpush1.xpose.msra.mxu0 0.0
    %91 = vmatprep.subr.mxu0 0.0
    %92 = vmatpush1.xpose.msra.mxu0 0.0
    %93 = vmatprep.subr.mxu0 0.0
    %94 = vmatpush1.xpose.msra.mxu0 0.0
    %95 = vmatprep.subr.mxu0 0.0
    %96 = vmatpush1.xpose.msra.mxu0 0.0
    %97 = vmatprep.subr.mxu0 0.0
    %98 = vmatpush1.xpose.msra.mxu0 0.0
    %99 = vmatprep.subr.mxu0 0.0
    %100 = vmatpush1.xpose.msra.mxu0 0.0
    %101 = vmatprep.subr.mxu0 0.0
    %102 = vmatpush1.xpose.msra.mxu0 0.0
    %103 = vmatprep.subr.mxu0 0.0
    %104 = vmatpush1.xpose.msra.mxu0 0.0
    %105 = vmatprep.subr.mxu0 0.0
    %106 = vmatpush1.xpose.msra.mxu0 0.0
    %107 = vmatprep.subr.mxu0 0.0
    %108 = vmatpush1.xpose.msra.mxu0 0.0
    %109 = vmatprep.subr.mxu0 0.0
    %110 = vmatpush1.xpose.msra.mxu0 0.0
    %111 = vmatprep.subr.mxu0 0.0
    %112 = vmatpush1.xpose.msra.mxu0 0.0
    %113 = vmatprep.subr.mxu0 0.0
    %114 = vmatpush1.xpose.msra.mxu0 0.0
    %115 = vmatprep.subr.mxu0 0.0
    %116 = vmatpush1.xpose.msra.mxu0 0.0
    %117 = vmatprep.subr.mxu0 0.0
    %118 = vmatpush1.xpose.msra.mxu0 0.0
    %119 = vmatprep.subr.mxu0 0.0
    %120 = vmatpush1.xpose.msra.mxu0 0.0
    %121 = vmatprep.subr.mxu0 0.0
    %122 = vmatpush1.xpose.msra.mxu0 0.0
    %123 = vmatprep.subr.mxu0 0.0
    %124 = vmatpush1.xpose.msra.mxu0 0.0
    %125 = vmatprep.mubr.f32.mxu0 0.0
    %126 = vmatmul.mubr.f32.gmra.mrb[0].mxu0 %v53
    %v127 = vpop.f32.mrb[0].mxu0
    %v128 = vadd.f32 %v49, %v127
    %v129 = vpop.f32.mrb[0].mxu0
    %130 = vdwg.mxu0
    %vm131 = vcmask 130048
    %132 = vst.msk [vmem:[#allocation7] sm:$0xff] %vm131, %v128
    // Predicated region
    $region22: #{tpu_custom_call.1} parent=1 // pred_check
      _
    $region23: #{tpu_custom_call.1} parent=1 // pred_check_branch
      %134 = sbr.rel (0) target = $region25
    $region24: #{tpu_custom_call.1} parent=1 // pred_region
      %s136 = ssub.s32 128, 128
      %137 = vsyncadd [#allocation4], %s136
      %s139 = sshll.u32 [#allocation7], 4
      %s140 = int_to_ptr.vmem [resolvable:$true] %s139
      %142 = dma.vmem_to_hbm [thread:$0]  %s140, 128, %s3, [#allocation4]
    $region25: #{tpu_custom_call.1} parent=1 // pred_fallthru
      _
    // Predicated region
    $region26: #{tpu_custom_call.1} parent=1 // pred_check
      _
    $region27: #{tpu_custom_call.1} parent=1 // pred_check_branch
      %144 = sbr.rel (0) target = $region29
    $region28: #{tpu_custom_call.1} parent=1 // pred_region
      %145 = dma.done [#allocation4], 128
    $region29: #{tpu_custom_call.1} parent=1 // pred_fallthru
      _
    %146 = vsyncpa [#allocation3], 1
    %147 = vsyncpa [#allocation6], 1
    %148 = vsyncpa [#allocation4], 1

</llo_original>
